<compile_context>
chip_gen: v6e
topology: v6e:2x2x1
jax: 0.10.0
libtpu: 0.0.40
codegen_flags: <defaults>
</compile_context>

<pallas_src>
import functools

import jax
import jax.numpy as jnp
from jax.experimental import pallas as pl
from jax.experimental.pallas import tpu as pltpu

KH = KW = 3
STRIDE = 2
BN_EPS = 1e-3


def _block3a_kernel(x_ref, w_ref, bn_ref, out_ref, *, wp):
    """Fused MaxPool(3,s2) + Conv3x3(s2)+BN+ReLU, one image per grid step.

    x_ref   : (1, 2, Hp*Wp, 2*Cin) f32  flat parity planes, W-parity in lanes:
                x_ref[0, a, i*Wp + j, 0:Cin]     = x[2i+a, 2j,   :]
                x_ref[0, a, i*Wp + j, Cin:2Cin]  = x[2i+a, 2j+1, :]
    w_ref   : (6, 2*Cin, Cout) bf16     per-kh weight pairs:
                w_ref[2kh]   = [w[:, :, kh, 0] ; w[:, :, kh, 1]]   (K = 2*Cin)
                w_ref[2kh+1] = [w[:, :, kh, 2] ; 0]
    bn_ref  : (2, Cout) f32             row0 = BN scale, row1 = BN shift
    out_ref : (M, Cin+Cout)             M = Ho*Wp rows; [maxpool | conv+BN+ReLU]
    """
    cin = x_ref.shape[-1] // 2
    m = out_ref.shape[0]
    cout = out_ref.shape[1] - cin

    acc = jnp.zeros((m, cout), jnp.float32)
    pooled = None
    for kh in range(KH):
        plane = x_ref.at[0, kh % 2]            # (Hp*Wp, 2*Cin) ref view (free)
        base = (kh // 2) * wp
        # Flat-plane trick: computing a full Wp columns per output row makes
        # every tap a single contiguous slice already in (M, 128) layout.
        v0 = plane[base:base + m, :]           # lanes: [kw=0 | kw=1]
        v1 = plane[base + 1:base + 1 + m, :]   # lanes: [kw=2 | unused]

        # ---- branch1: MaxPool2d(3, stride=2), exact f32 ----------------------
        pk = jnp.maximum(jnp.maximum(v0, v1),
                         pltpu.roll(v0, shift=cin, axis=1))  # bring kw=1 to lanes [0,cin)
        pooled = pk if pooled is None else jnp.maximum(pooled, pk)

        # ---- branch2: conv taps -- two K=128 bf16 matmuls, f32 accumulation --
        acc = acc + jnp.dot(v0.astype(jnp.bfloat16), w_ref[2 * kh],
                            preferred_element_type=jnp.float32)
        acc = acc + jnp.dot(v1.astype(jnp.bfloat16), w_ref[2 * kh + 1],
                            preferred_element_type=jnp.float32)

    # Inference BatchNorm + ReLU epilogue in f32 (scale kept out of bf16 weights).
    conv = jnp.maximum(acc * bn_ref[0:1, :] + bn_ref[1:2, :], 0.0)

    # Two lane-slab stores into the single fused 160-channel output block.
    out_ref[:, :cin] = pooled[:, :cin].astype(out_ref.dtype)
    out_ref[:, cin:] = conv.astype(out_ref.dtype)


@jax.jit
def incept_block3a(x_nchw, w_oihw, gamma, beta, run_mean, run_var, eps=BN_EPS):
    """Forward pass of InceptBlock3a. Input/output follow PyTorch NCHW."""
    N, Cin, H, W = x_nchw.shape
    Cout = w_oihw.shape[0]
    Ho = (H - KH) // STRIDE + 1
    Wo = (W - KW) // STRIDE + 1
    assert Ho >= 1 and Wo >= 1, "spatial dims must be >= 3"
    Hh = -(-H // 2)                     # ceil(H/2)
    Wh = -(-W // 2)
    Hp = Hh + 1                         # +1 padding row so the +1-row tap slice stays in bounds
    Wp = Wh
    while (Ho * Wp) % 8:                # keep the per-image row count sublane-aligned
        Wp += 1
    M = Ho * Wp
    Ctot = Cin + Cout
    out_dtype = x_nchw.dtype

    # ---- input: NCHW -> per-image flat parity planes (one fused pad+transpose pass) ----
    xp = jnp.pad(x_nchw, ((0, 0), (0, 0), (0, 2 * Hp - H), (0, 2 * Wp - W)))
    xr = (xp.reshape(N, Cin, Hp, 2, Wp, 2)
            .transpose(0, 3, 2, 4, 5, 1)          # (N, a, i, j, wb, c)
            .reshape(N, 2, Hp * Wp, 2 * Cin))     # lanes = [wb=0 chans | wb=1 chans]

    # ---- weights: OIHW -> 6 stacked (2*Cin, Cout) bf16 K-blocks ----
    w_hwio = jnp.transpose(w_oihw, (2, 3, 1, 0)).astype(jnp.float32)   # (kh, kw, ci, co)
    zeros = jnp.zeros((Cin, Cout), jnp.float32)
    blocks = []
    for kh in range(KH):
        blocks.append(jnp.concatenate([w_hwio[kh, 0], w_hwio[kh, 1]], axis=0))
        blocks.append(jnp.concatenate([w_hwio[kh, 2], zeros], axis=0))
    w2 = jnp.stack(blocks, axis=0).astype(jnp.bfloat16)                # (6, 2*Cin, Cout)

    # ---- BatchNorm (inference) scale/shift, f32 for the in-kernel epilogue ----
    inv_std = 1.0 / jnp.sqrt(run_var.astype(jnp.float32) + eps)
    scale = gamma.astype(jnp.float32) * inv_std
    shift = beta.astype(jnp.float32) - run_mean.astype(jnp.float32) * scale
    bn = jnp.stack([scale, shift], axis=0)                             # (2, Cout)

    out_flat = pl.pallas_call(
        functools.partial(_block3a_kernel, wp=Wp),
        out_shape=jax.ShapeDtypeStruct((N * M, Ctot), out_dtype),
        grid=(N,),
        in_specs=[
            pl.BlockSpec((1, 2, Hp * Wp, 2 * Cin), lambda n: (n, 0, 0, 0)),
            pl.BlockSpec((2 * KH, 2 * Cin, Cout), lambda n: (0, 0, 0)),
            pl.BlockSpec((2, Cout), lambda n: (0, 0)),
        ],
        out_specs=pl.BlockSpec((M, Ctot), lambda n: (n, 0)),
        compiler_params=pltpu.CompilerParams(
            dimension_semantics=("parallel",),
            vmem_limit_bytes=32 * 1024 * 1024),
    )(xr, w2, bn)

    # HBM reshape is metadata-only; the garbage-column strip fuses with the
    # NCHW transpose required by the module contract.  A channels-last
    # consumer could use out_flat.reshape(N, Ho, Wp, Ctot)[:, :, :Wo, :] directly.
    out = out_flat.reshape(N, Ho, Wp, Ctot)[:, :, :Wo, :]
    return jnp.transpose(out, (0, 3, 1, 2))


if __name__ == "__main__":
    key = jax.random.PRNGKey(0)
    k1, k2, k3, k4, k5, k6 = jax.random.split(key, 6)

    N, Cin, H, W = 2, 64, 16, 16     # module requires in_channels = 64
    Cout = 96

    x = jax.random.normal(k1, (N, Cin, H, W), jnp.float32)
    w = 0.05 * jax.random.normal(k2, (Cout, Cin, KH, KW), jnp.float32)   # Conv2d OIHW
    gamma = 1.0 + 0.1 * jax.random.normal(k3, (Cout,), jnp.float32)      # BN weight
    beta = 0.1 * jax.random.normal(k4, (Cout,), jnp.float32)             # BN bias
    run_mean = 0.05 * jax.random.normal(k5, (Cout,), jnp.float32)        # BN running_mean
    run_var = 1.0 + 0.1 * jax.random.uniform(k6, (Cout,), jnp.float32)   # BN running_var

    def reference(xin):
        conv = jax.lax.conv_general_dilated(
            xin, w, window_strides=(STRIDE, STRIDE), padding="VALID",
            dimension_numbers=("NCHW", "OIHW", "NCHW"),
            precision=jax.lax.Precision.HIGHEST)
        inv_std = 1.0 / jnp.sqrt(run_var + BN_EPS)
        conv = conv * (gamma * inv_std)[None, :, None, None] + (
            beta - run_mean * gamma * inv_std)[None, :, None, None]
        conv = jnp.maximum(conv, 0.0)
        pool = jax.lax.reduce_window(
            xin, -jnp.inf, jax.lax.max,
            window_dimensions=(1, 1, KH, KW),
            window_strides=(1, 1, STRIDE, STRIDE),
            padding="VALID")
        return jnp.concatenate([pool, conv], axis=1)

    out = jax.block_until_ready(incept_block3a(x, w, gamma, beta, run_mean, run_var))
    Ho = (H - KH) // STRIDE + 1
    Wo = (W - KW) // STRIDE + 1
    assert out.shape == (N, Cin + Cout, Ho, Wo), out.shape

    ref = reference(x)
    # maxpool branch now runs on f32 data in-kernel -> (near-)exact match.
    assert jnp.allclose(out[:, :Cin], ref[:, :Cin], rtol=0.0, atol=1e-6)
    # conv branch: bf16 MXU matmuls with f32 accumulation + f32 BN/ReLU epilogue.
    max_err = float(jnp.max(jnp.abs(out - ref)))
    assert jnp.allclose(out, ref, rtol=2e-2, atol=2e-2), max_err

    # Odd spatial dims (the real Mixed-3a stem input is 147x147) and N=1 path.
    x_odd = jax.random.normal(jax.random.PRNGKey(1), (1, Cin, 9, 9), jnp.float32)
    out_odd = jax.block_until_ready(
        incept_block3a(x_odd, w, gamma, beta, run_mean, run_var))
    ref_odd = reference(x_odd)
    assert out_odd.shape == ref_odd.shape, (out_odd.shape, ref_odd.shape)
    assert jnp.allclose(out_odd[:, :Cin], ref_odd[:, :Cin], rtol=0.0, atol=1e-6)
    assert jnp.allclose(out_odd, ref_odd, rtol=2e-2, atol=2e-2)

    print("KERNEL_OK")
</pallas_src>

<mosaic_0001>
module attributes {stable_mosaic.version = 11 : i64} {
  func.func @_block3a_kernel(%arg0: i32, %arg1: memref<1x2x72x128xf32, #tpu.memory_space<vmem>>, %arg2: memref<6x128x96xbf16, #tpu.memory_space<vmem>>, %arg3: memref<2x96xf32, #tpu.memory_space<vmem>>, %arg4: memref<56x160xf32, #tpu.memory_space<vmem>>) attributes {dimension_semantics = [#tpu.dimension_semantics<parallel>], iteration_bounds = array<i64: 2>, scalar_prefetch = 0 : i64, scratch_operands = 0 : i64, tpu.core_type = #tpu.core_type<tc>, window_params = [{transform_indices = @transform_0, window_bounds = array<i64: 1, 2, 72, 128>}, {pipeline_mode = #tpu.pipeline_mode<synchronous>, transform_indices = @transform_1, window_bounds = array<i64: 6, 128, 96>}, {pipeline_mode = #tpu.pipeline_mode<synchronous>, transform_indices = @transform_2, window_bounds = array<i64: 2, 96>}, {transform_indices = @transform_3, window_bounds = array<i64: 56, 160>}]} {
    %cst = arith.constant 0.000000e+00 : f32
    %0 = vector.broadcast %cst : f32 to vector<56x96xf32>
    %c0_i32 = arith.constant 0 : i32
    %c0_i32_0 = arith.constant 0 : i32
    %c0_i32_1 = arith.constant 0 : i32
    %c0_i32_2 = arith.constant 0 : i32
    %1 = tpu.memref_slice %arg1[%c0_i32, %c0_i32_0, %c0_i32_1, %c0_i32_2] : memref<1x2x72x128xf32, #tpu.memory_space<vmem>> -> memref<1x1x72x128xf32, #tpu.memory_space<vmem>>
    %2 = tpu.memref_squeeze %1 : memref<1x1x72x128xf32, #tpu.memory_space<vmem>> -> memref<72x128xf32, #tpu.memory_space<vmem>>
    %c0 = arith.constant 0 : index
    %c0_3 = arith.constant 0 : index
    %3 = vector.load %2[%c0, %c0_3] : memref<72x128xf32, #tpu.memory_space<vmem>>, vector<56x128xf32>
    %c0_i32_4 = arith.constant 0 : i32
    %c0_i32_5 = arith.constant 0 : i32
    %c0_i32_6 = arith.constant 0 : i32
    %c0_i32_7 = arith.constant 0 : i32
    %4 = tpu.memref_slice %arg1[%c0_i32_4, %c0_i32_5, %c0_i32_6, %c0_i32_7] : memref<1x2x72x128xf32, #tpu.memory_space<vmem>> -> memref<1x1x72x128xf32, #tpu.memory_space<vmem>>
    %5 = tpu.memref_squeeze %4 : memref<1x1x72x128xf32, #tpu.memory_space<vmem>> -> memref<72x128xf32, #tpu.memory_space<vmem>>
    %c1 = arith.constant 1 : index
    %c0_8 = arith.constant 0 : index
    %6 = vector.load %5[%c1, %c0_8] : memref<72x128xf32, #tpu.memory_space<vmem>>, vector<56x128xf32>
    %7 = arith.maximumf %3, %6 : vector<56x128xf32>
    %c64_i32 = arith.constant 64 : i32
    %8 = tpu.dynamic_rotate %3 by %c64_i32 dim 1 : vector<56x128xf32>, i32 -> vector<56x128xf32>
    %9 = arith.maximumf %7, %8 : vector<56x128xf32>
    %10 = arith.truncf %3 : vector<56x128xf32> to vector<56x128xbf16>
    %c0_9 = arith.constant 0 : index
    %c0_10 = arith.constant 0 : index
    %c0_11 = arith.constant 0 : index
    %11 = vector.load %arg2[%c0_9, %c0_10, %c0_11] : memref<6x128x96xbf16, #tpu.memory_space<vmem>>, vector<1x128x96xbf16>
    %12 = vector.shape_cast %11 : vector<1x128x96xbf16> to vector<128x96xbf16>
    %cst_12 = arith.constant dense<0.000000e+00> : vector<56x96xf32>
    %13 = tpu.matmul %10, %12, %cst_12 {dimension_numbers = #tpu.dot_dimension_numbers<[1], [0], [0], [1], [0, 0, 1, 1], [], []>} : vector<56x128xbf16>, vector<128x96xbf16>, vector<56x96xf32> -> vector<56x96xf32>
    %14 = arith.addf %0, %13 : vector<56x96xf32>
    %15 = arith.truncf %6 : vector<56x128xf32> to vector<56x128xbf16>
    %c1_13 = arith.constant 1 : index
    %c0_14 = arith.constant 0 : index
    %c0_15 = arith.constant 0 : index
    %16 = vector.load %arg2[%c1_13, %c0_14, %c0_15] : memref<6x128x96xbf16, #tpu.memory_space<vmem>>, vector<1x128x96xbf16>
    %17 = vector.shape_cast %16 : vector<1x128x96xbf16> to vector<128x96xbf16>
    %cst_16 = arith.constant dense<0.000000e+00> : vector<56x96xf32>
    %18 = tpu.matmul %15, %17, %cst_16 {dimension_numbers = #tpu.dot_dimension_numbers<[1], [0], [0], [1], [0, 0, 1, 1], [], []>} : vector<56x128xbf16>, vector<128x96xbf16>, vector<56x96xf32> -> vector<56x96xf32>
    %19 = arith.addf %14, %18 : vector<56x96xf32>
    %c0_i32_17 = arith.constant 0 : i32
    %c1_i32 = arith.constant 1 : i32
    %c0_i32_18 = arith.constant 0 : i32
    %c0_i32_19 = arith.constant 0 : i32
    %20 = tpu.memref_slice %arg1[%c0_i32_17, %c1_i32, %c0_i32_18, %c0_i32_19] : memref<1x2x72x128xf32, #tpu.memory_space<vmem>> -> memref<1x1x72x128xf32, #tpu.memory_space<vmem>>
    %21 = tpu.memref_squeeze %20 : memref<1x1x72x128xf32, #tpu.memory_space<vmem>> -> memref<72x128xf32, #tpu.memory_space<vmem>>
    %c0_20 = arith.constant 0 : index
    %c0_21 = arith.constant 0 : index
    %22 = vector.load %21[%c0_20, %c0_21] : memref<72x128xf32, #tpu.memory_space<vmem>>, vector<56x128xf32>
    %c0_i32_22 = arith.constant 0 : i32
    %c1_i32_23 = arith.constant 1 : i32
    %c0_i32_24 = arith.constant 0 : i32
    %c0_i32_25 = arith.constant 0 : i32
    %23 = tpu.memref_slice %arg1[%c0_i32_22, %c1_i32_23, %c0_i32_24, %c0_i32_25] : memref<1x2x72x128xf32, #tpu.memory_space<vmem>> -> memref<1x1x72x128xf32, #tpu.memory_space<vmem>>
    %24 = tpu.memref_squeeze %23 : memref<1x1x72x128xf32, #tpu.memory_space<vmem>> -> memref<72x128xf32, #tpu.memory_space<vmem>>
    %c1_26 = arith.constant 1 : index
    %c0_27 = arith.constant 0 : index
    %25 = vector.load %24[%c1_26, %c0_27] : memref<72x128xf32, #tpu.memory_space<vmem>>, vector<56x128xf32>
    %26 = arith.maximumf %22, %25 : vector<56x128xf32>
    %c64_i32_28 = arith.constant 64 : i32
    %27 = tpu.dynamic_rotate %22 by %c64_i32_28 dim 1 : vector<56x128xf32>, i32 -> vector<56x128xf32>
    %28 = arith.maximumf %26, %27 : vector<56x128xf32>
    %29 = arith.maximumf %9, %28 : vector<56x128xf32>
    %30 = arith.truncf %22 : vector<56x128xf32> to vector<56x128xbf16>
    %c2 = arith.constant 2 : index
    %c0_29 = arith.constant 0 : index
    %c0_30 = arith.constant 0 : index
    %31 = vector.load %arg2[%c2, %c0_29, %c0_30] : memref<6x128x96xbf16, #tpu.memory_space<vmem>>, vector<1x128x96xbf16>
    %32 = vector.shape_cast %31 : vector<1x128x96xbf16> to vector<128x96xbf16>
    %cst_31 = arith.constant dense<0.000000e+00> : vector<56x96xf32>
    %33 = tpu.matmul %30, %32, %cst_31 {dimension_numbers = #tpu.dot_dimension_numbers<[1], [0], [0], [1], [0, 0, 1, 1], [], []>} : vector<56x128xbf16>, vector<128x96xbf16>, vector<56x96xf32> -> vector<56x96xf32>
    %34 = arith.addf %19, %33 : vector<56x96xf32>
    %35 = arith.truncf %25 : vector<56x128xf32> to vector<56x128xbf16>
    %c3 = arith.constant 3 : index
    %c0_32 = arith.constant 0 : index
    %c0_33 = arith.constant 0 : index
    %36 = vector.load %arg2[%c3, %c0_32, %c0_33] : memref<6x128x96xbf16, #tpu.memory_space<vmem>>, vector<1x128x96xbf16>
    %37 = vector.shape_cast %36 : vector<1x128x96xbf16> to vector<128x96xbf16>
    %cst_34 = arith.constant dense<0.000000e+00> : vector<56x96xf32>
    %38 = tpu.matmul %35, %37, %cst_34 {dimension_numbers = #tpu.dot_dimension_numbers<[1], [0], [0], [1], [0, 0, 1, 1], [], []>} : vector<56x128xbf16>, vector<128x96xbf16>, vector<56x96xf32> -> vector<56x96xf32>
    %39 = arith.addf %34, %38 : vector<56x96xf32>
    %c0_i32_35 = arith.constant 0 : i32
    %c0_i32_36 = arith.constant 0 : i32
    %c0_i32_37 = arith.constant 0 : i32
    %c0_i32_38 = arith.constant 0 : i32
    %40 = tpu.memref_slice %arg1[%c0_i32_35, %c0_i32_36, %c0_i32_37, %c0_i32_38] : memref<1x2x72x128xf32, #tpu.memory_space<vmem>> -> memref<1x1x72x128xf32, #tpu.memory_space<vmem>>
    %41 = tpu.memref_squeeze %40 : memref<1x1x72x128xf32, #tpu.memory_space<vmem>> -> memref<72x128xf32, #tpu.memory_space<vmem>>
    %c8 = arith.constant 8 : index
    %c0_39 = arith.constant 0 : index
    %42 = vector.load %41[%c8, %c0_39] : memref<72x128xf32, #tpu.memory_space<vmem>>, vector<56x128xf32>
    %c0_i32_40 = arith.constant 0 : i32
    %c0_i32_41 = arith.constant 0 : i32
    %c0_i32_42 = arith.constant 0 : i32
    %c0_i32_43 = arith.constant 0 : i32
    %43 = tpu.memref_slice %arg1[%c0_i32_40, %c0_i32_41, %c0_i32_42, %c0_i32_43] : memref<1x2x72x128xf32, #tpu.memory_space<vmem>> -> memref<1x1x72x128xf32, #tpu.memory_space<vmem>>
    %44 = tpu.memref_squeeze %43 : memref<1x1x72x128xf32, #tpu.memory_space<vmem>> -> memref<72x128xf32, #tpu.memory_space<vmem>>
    %c9 = arith.constant 9 : index
    %c0_44 = arith.constant 0 : index
    %45 = vector.load %44[%c9, %c0_44] : memref<72x128xf32, #tpu.memory_space<vmem>>, vector<56x128xf32>
    %46 = arith.maximumf %42, %45 : vector<56x128xf32>
    %c64_i32_45 = arith.constant 64 : i32
    %47 = tpu.dynamic_rotate %42 by %c64_i32_45 dim 1 : vector<56x128xf32>, i32 -> vector<56x128xf32>
    %48 = arith.maximumf %46, %47 : vector<56x128xf32>
    %49 = arith.maximumf %29, %48 : vector<56x128xf32>
    %50 = arith.truncf %42 : vector<56x128xf32> to vector<56x128xbf16>
    %c4 = arith.constant 4 : index
    %c0_46 = arith.constant 0 : index
    %c0_47 = arith.constant 0 : index
    %51 = vector.load %arg2[%c4, %c0_46, %c0_47] : memref<6x128x96xbf16, #tpu.memory_space<vmem>>, vector<1x128x96xbf16>
    %52 = vector.shape_cast %51 : vector<1x128x96xbf16> to vector<128x96xbf16>
    %cst_48 = arith.constant dense<0.000000e+00> : vector<56x96xf32>
    %53 = tpu.matmul %50, %52, %cst_48 {dimension_numbers = #tpu.dot_dimension_numbers<[1], [0], [0], [1], [0, 0, 1, 1], [], []>} : vector<56x128xbf16>, vector<128x96xbf16>, vector<56x96xf32> -> vector<56x96xf32>
    %54 = arith.addf %39, %53 : vector<56x96xf32>
    %55 = arith.truncf %45 : vector<56x128xf32> to vector<56x128xbf16>
    %c5 = arith.constant 5 : index
    %c0_49 = arith.constant 0 : index
    %c0_50 = arith.constant 0 : index
    %56 = vector.load %arg2[%c5, %c0_49, %c0_50] : memref<6x128x96xbf16, #tpu.memory_space<vmem>>, vector<1x128x96xbf16>
    %57 = vector.shape_cast %56 : vector<1x128x96xbf16> to vector<128x96xbf16>
    %cst_51 = arith.constant dense<0.000000e+00> : vector<56x96xf32>
    %58 = tpu.matmul %55, %57, %cst_51 {dimension_numbers = #tpu.dot_dimension_numbers<[1], [0], [0], [1], [0, 0, 1, 1], [], []>} : vector<56x128xbf16>, vector<128x96xbf16>, vector<56x96xf32> -> vector<56x96xf32>
    %59 = arith.addf %54, %58 : vector<56x96xf32>
    %c0_52 = arith.constant 0 : index
    %c0_53 = arith.constant 0 : index
    %60 = vector.load %arg3[%c0_52, %c0_53] : memref<2x96xf32, #tpu.memory_space<vmem>>, vector<1x96xf32>
    %61 = vector.broadcast %60 : vector<1x96xf32> to vector<56x96xf32>
    %62 = arith.mulf %59, %61 : vector<56x96xf32>
    %c1_54 = arith.constant 1 : index
    %c0_55 = arith.constant 0 : index
    %63 = vector.load %arg3[%c1_54, %c0_55] : memref<2x96xf32, #tpu.memory_space<vmem>>, vector<1x96xf32>
    %64 = vector.broadcast %63 : vector<1x96xf32> to vector<56x96xf32>
    %65 = arith.addf %62, %64 : vector<56x96xf32>
    %cst_56 = arith.constant 0.000000e+00 : f32
    %66 = vector.broadcast %cst_56 : f32 to vector<56x96xf32>
    %67 = arith.maximumf %65, %66 : vector<56x96xf32>
    %68 = vector.extract_strided_slice %49 {offsets = [0, 0], sizes = [56, 64], strides = [1, 1]} : vector<56x128xf32> to vector<56x64xf32>
    %c0_57 = arith.constant 0 : index
    %c0_58 = arith.constant 0 : index
    %69 = vector.load %arg4[%c0_57, %c0_58] : memref<56x160xf32, #tpu.memory_space<vmem>>, vector<56x64xf32>
    tpu.vector_store %arg4[%c0_57, %c0_58], %68 {strides = array<i32>} : memref<56x160xf32, #tpu.memory_space<vmem>>, vector<56x64xf32>,
    %c0_59 = arith.constant 0 : index
    %c64 = arith.constant 64 : index
    %70 = vector.load %arg4[%c0_59, %c64] : memref<56x160xf32, #tpu.memory_space<vmem>>, vector<56x96xf32>
    tpu.vector_store %arg4[%c0_59, %c64], %67 {strides = array<i32>} : memref<56x160xf32, #tpu.memory_space<vmem>>, vector<56x96xf32>,
    return
  }
  func.func @transform_0(%arg0: i32) -> (i32, i32, i32, i32) {
    %c0_i32 = arith.constant 0 : i32
    %c0_i32_0 = arith.constant 0 : i32
    %c0_i32_1 = arith.constant 0 : i32
    %c0_i32_2 = arith.constant 0 : i32
    return %arg0, %c0_i32, %c0_i32_0, %c0_i32_1 : i32, i32, i32, i32
  }
  func.func @transform_1(%arg0: i32) -> (i32, i32, i32) {
    %c0_i32 = arith.constant 0 : i32
    %c0_i32_0 = arith.constant 0 : i32
    %c0_i32_1 = arith.constant 0 : i32
    %c0_i32_2 = arith.constant 0 : i32
    return %c0_i32, %c0_i32_0, %c0_i32_1 : i32, i32, i32
  }
  func.func @transform_2(%arg0: i32) -> (i32, i32) {
    %c0_i32 = arith.constant 0 : i32
    %c0_i32_0 = arith.constant 0 : i32
    %c0_i32_1 = arith.constant 0 : i32
    return %c0_i32, %c0_i32_0 : i32, i32
  }
  func.func @transform_3(%arg0: i32) -> (i32, i32) {
    %c0_i32 = arith.constant 0 : i32
    %c0_i32_0 = arith.constant 0 : i32
    return %arg0, %c0_i32 : i32, i32
  }
}

</mosaic_0001>

<llo_original>
// kernel: incept_block3a.1
$region0: #{incept_block3a.1}
  #allocation0 [shape = 'u32[]', space=smem, size = 0x4, offset = 0x4, fixed_abs, tag = 'smem constant byte address 0x4 - core index']
  #allocation1 [shape = 'u32[144,128]{1,0:T(1,128)}', space=vmem, size = 0x12000, scoped, tag = 'internal scratch']
  %s0 = inlined_call_operand.vmem [shape: f32[2,2,72,128], index: 0, kind: input, shape index: {}]
  %s1 = inlined_call_operand.vmem [shape: bf16[6,128,96], index: 1, kind: input, shape index: {}]
  %s2 = inlined_call_operand.vmem [shape: f32[2,96], index: 2, kind: input, shape index: {}]
  %s3 = inlined_call_operand.vmem [shape: f32[112,160], index: 3, kind: output, shape index: {}]
  %s4 = sld [smem:[#allocation0]]
  $region45: #{incept_block3a.1} parent=0
    _
  %s6 = ssub.s32 1, %s4
  %s7 = scalar_select 0, %s6, %s4
  loop: start=0, step=1, limit=4
  $region2: #{incept_block3a.1} parent=0 // loop_pre_header
    _
  $region3: #{incept_block3a.1} parent=0 // loop_header
    %s9 = sphi 0, %s13
    %p10 = scmp.ge.s32.totalorder %s9, 4
    %s19 = sphi 0, %s21
    %s22 = sphi 0, %s19
    %s23 = sphi 0, %s22
    %s39 = sphi 0, %s23
    %s43 = sphi 0, %s43
    %s45 = sphi 0, %s43
    %s46 = sphi 0, %s45
    %s60 = sphi 0, %s46
    %s64 = sphi 0, %s64
    %s66 = sphi 0, %s64
    %s67 = sphi 0, %s66
    %s81 = sphi 0, %s67
    %s87 = sphi 0, %s89
    %s90 = sphi 0, %s87
    %s91 = sphi 0, %s90
    %s107 = sphi 0, %s91
  $region4: #{incept_block3a.1} parent=0 // loop_header_branch
    %12 = sbr.rel (%p10) target = $region8
  $region5: #{incept_block3a.1} parent=0 // loop_body
    %s14 = ssub.s32 %s9, 1
    %s15 = ssub.s32 %s9, 2
    %s16 = sadd.s32 %s9, 1
    %s17 = ssub.s32 %s9, %s16
    %p18 = scmp.eq.s32.totalorder %s17, 0
    %s20 = sadd.s32 %s19, 1
    %s21 = scalar_select %p18, %s19, %s20
    %p24 = pneg %p18
    %p25 = scmp.eq.s32.totalorder %s9, 1
    %p26 = por %p24, %p25
    %p27 = scmp.ne.s32.totalorder %s19, %s22
    %p28 = scmp.eq.s32.totalorder %s9, 0
    %p29 = por %p27, %p28
    %p30 = scmp.ne.s32.totalorder %s19, %s22
    %p31 = scmp.eq.s32.totalorder %s14, 1
    %p32 = por %p30, %p31
    %p33 = scmp.ne.s32.totalorder %s22, %s23
    %p34 = scmp.eq.s32.totalorder %s14, 0
    %p35 = por %p33, %p34
    %p36 = scmp.ne.s32.totalorder %s22, %s23
    %p37 = scmp.eq.s32.totalorder %s15, 1
    %p38 = por %p36, %p37
    %p40 = scmp.ne.s32.totalorder %s23, %s39
    %p41 = scmp.eq.s32.totalorder %s15, 0
    %p42 = por %p40, %p41
    %s44 = sadd.s32 %s43, 1
    %p47 = scmp.eq.s32.totalorder %s9, 1
    %p48 = scmp.ne.s32.totalorder %s43, %s45
    %p49 = scmp.eq.s32.totalorder %s9, 0
    %p50 = por %p48, %p49
    %p51 = scmp.ne.s32.totalorder %s43, %s45
    %p52 = scmp.eq.s32.totalorder %s14, 1
    %p53 = por %p51, %p52
    %p54 = scmp.ne.s32.totalorder %s45, %s46
    %p55 = scmp.eq.s32.totalorder %s14, 0
    %p56 = por %p54, %p55
    %p57 = scmp.ne.s32.totalorder %s45, %s46
    %p58 = scmp.eq.s32.totalorder %s15, 1
    %p59 = por %p57, %p58
    %p61 = scmp.ne.s32.totalorder %s46, %s60
    %p62 = scmp.eq.s32.totalorder %s15, 0
    %p63 = por %p61, %p62
    %s65 = sadd.s32 %s64, 1
    %p68 = scmp.eq.s32.totalorder %s9, 1
    %p69 = scmp.ne.s32.totalorder %s64, %s66
    %p70 = scmp.eq.s32.totalorder %s9, 0
    %p71 = por %p69, %p70
    %p72 = scmp.ne.s32.totalorder %s64, %s66
    %p73 = scmp.eq.s32.totalorder %s14, 1
    %p74 = por %p72, %p73
    %p75 = scmp.ne.s32.totalorder %s66, %s67
    %p76 = scmp.eq.s32.totalorder %s14, 0
    %p77 = por %p75, %p76
    %p78 = scmp.ne.s32.totalorder %s66, %s67
    %p79 = scmp.eq.s32.totalorder %s15, 1
    %p80 = por %p78, %p79
    %p82 = scmp.ne.s32.totalorder %s67, %s81
    %p83 = scmp.eq.s32.totalorder %s15, 0
    %p84 = por %p82, %p83
    %s85 = ssub.s32 %s9, %s16
    %p86 = scmp.eq.s32.totalorder %s85, 0
    %s88 = sadd.s32 %s87, 1
    %s89 = scalar_select %p86, %s87, %s88
    %p92 = pneg %p86
    %p93 = scmp.eq.s32.totalorder %s9, 1
    %p94 = por %p92, %p93
    %p95 = scmp.ne.s32.totalorder %s87, %s90
    %p96 = scmp.eq.s32.totalorder %s9, 0
    %p97 = por %p95, %p96
    %p98 = scmp.ne.s32.totalorder %s87, %s90
    %p99 = scmp.eq.s32.totalorder %s14, 1
    %p100 = por %p98, %p99
    %p101 = scmp.ne.s32.totalorder %s90, %s91
    %p102 = scmp.eq.s32.totalorder %s14, 0
    %p103 = por %p101, %p102
    %p104 = scmp.ne.s32.totalorder %s90, %s91
    %p105 = scmp.eq.s32.totalorder %s15, 1
    %p106 = por %p104, %p105
    %p108 = scmp.ne.s32.totalorder %s91, %s107
    %p109 = scmp.eq.s32.totalorder %s15, 0
    %p110 = por %p108, %p109
    %p111 = scmp.le.s32.totalorder 1, %s9
    %p112 = scmp.lt.s32.totalorder %s9, 3
    %p113 = pnand %p111, %p112
    %p114 = pneg %p113
    // Predicated region
    $region9: #{incept_block3a.1} parent=5 // pred_check
      _
    $region10: #{incept_block3a.1} parent=5 // pred_check_branch
      %116 = sbr.rel (%p113) target = $region12
    $region11: #{incept_block3a.1} parent=5 // pred_region
      %s117 = ssub.s32 %s9, 1
      // Predicated region
      $region13: #{incept_block3a.1} parent=11 // pred_check
        %p118 = pneg %p56
      $region14: #{incept_block3a.1} parent=11 // pred_check_branch
        %120 = sbr.rel (%p118) target = $region16
      $region15: #{incept_block3a.1} parent=11 // pred_region
        _
      $region16: #{incept_block3a.1} parent=11 // pred_fallthru
        _
      // Predicated region
      $region17: #{incept_block3a.1} parent=11 // pred_check
        %p121 = pneg %p77
      $region18: #{incept_block3a.1} parent=11 // pred_check_branch
        %123 = sbr.rel (%p121) target = $region20
      $region19: #{incept_block3a.1} parent=11 // pred_region
        _
      $region20: #{incept_block3a.1} parent=11 // pred_fallthru
        _
    $region12: #{incept_block3a.1} parent=5 // pred_fallthru
      _
    %p124 = scmp.lt.s32.totalorder %s9, 2
    // Predicated region
    $region21: #{incept_block3a.1} parent=5 // pred_check
      %p125 = pneg %p124
    $region22: #{incept_block3a.1} parent=5 // pred_check_branch
      %127 = sbr.rel (%p125) target = $region24
    $region23: #{incept_block3a.1} parent=5 // pred_region
      // Predicated region
      $region25: #{incept_block3a.1} parent=23 // pred_check
        %p128 = pneg %p29
      $region26: #{incept_block3a.1} parent=23 // pred_check_branch
        %130 = sbr.rel (%p128) target = $region28
      $region27: #{incept_block3a.1} parent=23 // pred_region
        %p131 = scmp.lt.s32.totalorder %s9, 1
        %s132 = scalar_select %p131, %s9, 1
        %s133 = smul.addr %s132, 18
        %s134 = smul.addr %s133, 8
        %s135 = scalar_lea.vmem %s0, %s134
      $region28: #{incept_block3a.1} parent=23 // pred_fallthru
        _
    $region24: #{incept_block3a.1} parent=5 // pred_fallthru
      _
    %p136 = scmp.le.s32.totalorder 1, %s9
    %p137 = scmp.lt.s32.totalorder %s9, 3
    %p138 = pnand %p136, %p137
    %p139 = pneg %p138
    // Predicated region
    $region29: #{incept_block3a.1} parent=5 // pred_check
      _
    $region30: #{incept_block3a.1} parent=5 // pred_check_branch
      %141 = sbr.rel (%p138) target = $region32
    $region31: #{incept_block3a.1} parent=5 // pred_region
      %s142 = ssub.s32 %s9, 1
      %p143 = scmp.lt.s32.totalorder %s14, 1
      %s144 = scalar_select %p143, %s14, 1
      %s145 = smul.addr %s144, 18
      %s146 = smul.addr %s145, 8
      %s147 = scalar_lea.vmem %s0, %s146
      %p148 = pneg %p35
      %p149 = pneg %p32
      %p150 = pneg %p56
      %p151 = pneg %p53
      %p152 = pneg %p77
      %p153 = pneg %p74
      %p154 = pneg %p103
      %p155 = pneg %p100
      %s156 = smul.u32 7, %s14
      %p157 = scmp.lt.s32.totalorder %s156, 13
      %s158 = scalar_select %p157, %s156, 13
      %s159 = smul.addr %s158, 2
      %s160 = smul.addr %s159, 8
      %s161 = scalar_lea.vmem %s3, %s160
      %p162 = scmp.lt.s32.totalorder %s14, 1
      %s163 = scalar_select %p162, %s14, 1
      %s164 = smul.addr %s163, 18
      %s165 = smul.addr %s164, 8
      %s166 = scalar_lea.vmem %s0, %s165
      %s167 = smul.u32 7, %s14
      %p168 = scmp.lt.s32.totalorder %s167, 13
      %s169 = scalar_select %p168, %s167, 13
      %s170 = smul.addr %s169, 2
      %s171 = smul.addr %s170, 8
      %s172 = scalar_lea.vmem %s3, %s171
      %s173 = smul.u32 7, %s14
      %v175 = vld [vmem:[%s166] sm:$0xff]
      %v176 = vld [vmem:[%s166 + $0x8] sm:$0xff]
      %v177 = vld [vmem:[%s166 + $0x10] sm:$0xff]
      %v178 = vld [vmem:[%s166 + $0x18] sm:$0xff]
      %v179 = vld [vmem:[%s166 + $0x20] sm:$0xff]
      %v180 = vld [vmem:[%s166 + $0x28] sm:$0xff]
      %v181 = vld [vmem:[%s166 + $0x30] sm:$0xff]
      %v182 = vld [vmem:[%s166 + $0x1] sm:$0xff]
      %v183 = vld [vmem:[%s166 + $0x9] sm:$0xff]
      %v184 = vld [vmem:[%s166 + $0x11] sm:$0xff]
      %v185 = vld [vmem:[%s166 + $0x19] sm:$0xff]
      %v186 = vld [vmem:[%s166 + $0x21] sm:$0xff]
      %v187 = vld [vmem:[%s166 + $0x29] sm:$0xff]
      %v188 = vld [vmem:[%s166 + $0x31] sm:$0xff]
      %v189 = vmax.f32 %v175, %v182
      %v190 = vmax.f32 %v176, %v183
      %v191 = vmax.f32 %v177, %v184
      %v192 = vmax.f32 %v178, %v185
      %v193 = vmax.f32 %v179, %v186
      %v194 = vmax.f32 %v180, %v187
      %v195 = vmax.f32 %v181, %v188
      %196 = vrot.lane.b32.xlu0 %v175, 64
      %v197 = vpop.permute.xlu0 %196
      %198 = vrot.lane.b32.xlu0 %v176, 64
      %v199 = vpop.permute.xlu0 %198
      %200 = vrot.lane.b32.xlu0 %v177, 64
      %v201 = vpop.permute.xlu0 %200
      %202 = vrot.lane.b32.xlu0 %v178, 64
      %v203 = vpop.permute.xlu0 %202
      %204 = vrot.lane.b32.xlu0 %v179, 64
      %v205 = vpop.permute.xlu0 %204
      %206 = vrot.lane.b32.xlu0 %v180, 64
      %v207 = vpop.permute.xlu0 %206
      %208 = vrot.lane.b32.xlu0 %v181, 64
      %v209 = vpop.permute.xlu0 %208
      %v210 = vmax.f32 %v189, %v197
      %v211 = vmax.f32 %v190, %v199
      %v212 = vmax.f32 %v191, %v201
      %v213 = vmax.f32 %v192, %v203
      %v214 = vmax.f32 %v193, %v205
      %v215 = vmax.f32 %v194, %v207
      %v216 = vmax.f32 %v195, %v209
      %v217 = vpack.c.bf16 %v176, %v175
      %v218 = vpack.c.bf16 %v178, %v177
      %v219 = vpack.c.bf16 %v180, %v179
      %v220 = vpack.c.bf16 %v181, %v181
      %v221 = vld [vmem:[%s1] sm:$0xf]
      %v222 = vld [vmem:[%s1 + $0x4] sm:$0xf]
      %v223 = vld [vmem:[%s1 + $0x8] sm:$0xf]
      %v224 = vld [vmem:[%s1 + $0xc] sm:$0xf]
      %v225 = vld [vmem:[%s1 + $0x10] sm:$0xf]
      %v226 = vld [vmem:[%s1 + $0x14] sm:$0xf]
      %v227 = vld [vmem:[%s1 + $0x18] sm:$0xf]
      %v228 = vld [vmem:[%s1 + $0x1c] sm:$0xf]
      %v229 = vld [vmem:[%s1 + $0x20] sm:$0xf]
      %v230 = vld [vmem:[%s1 + $0x24] sm:$0xf]
      %v231 = vld [vmem:[%s1 + $0x28] sm:$0xf]
      %v232 = vld [vmem:[%s1 + $0x2c] sm:$0xf]
      %v233 = vld [vmem:[%s1 + $0x30] sm:$0xf]
      %v234 = vld [vmem:[%s1 + $0x34] sm:$0xf]
      %v235 = vld [vmem:[%s1 + $0x38] sm:$0xf]
      %v236 = vld [vmem:[%s1 + $0x3c] sm:$0xf]
      %v237 = vpack.c.bf16 %v183, %v182
      %v238 = vpack.c.bf16 %v185, %v184
      %v239 = vpack.c.bf16 %v187, %v186
      %v240 = vpack.c.bf16 %v188, %v188
      %s241 = scalar_lea.vmem %s1, 64
      %v242 = vld [vmem:[%s241] sm:$0xf]
      %v243 = vld [vmem:[%s241 + $0x4] sm:$0xf]
      %v244 = vld [vmem:[%s241 + $0x8] sm:$0xf]
      %v245 = vld [vmem:[%s241 + $0xc] sm:$0xf]
      %v246 = vld [vmem:[%s241 + $0x10] sm:$0xf]
      %v247 = vld [vmem:[%s241 + $0x14] sm:$0xf]
      %v248 = vld [vmem:[%s241 + $0x18] sm:$0xf]
      %v249 = vld [vmem:[%s241 + $0x1c] sm:$0xf]
      %v250 = vld [vmem:[%s241 + $0x20] sm:$0xf]
      %v251 = vld [vmem:[%s241 + $0x24] sm:$0xf]
      %v252 = vld [vmem:[%s241 + $0x28] sm:$0xf]
      %v253 = vld [vmem:[%s241 + $0x2c] sm:$0xf]
      %v254 = vld [vmem:[%s241 + $0x30] sm:$0xf]
      %v255 = vld [vmem:[%s241 + $0x34] sm:$0xf]
      %v256 = vld [vmem:[%s241 + $0x38] sm:$0xf]
      %v257 = vld [vmem:[%s241 + $0x3c] sm:$0xf]
      %v274 = vunpack.c.l.b16 %v242
      %v275 = vunpack.c.l.b16 %v243
      %v276 = vunpack.c.l.b16 %v244
      %v277 = vunpack.c.l.b16 %v245
      %v278 = vunpack.c.l.b16 %v246
      %v279 = vunpack.c.l.b16 %v247
      %v280 = vunpack.c.l.b16 %v248
      %v281 = vunpack.c.l.b16 %v249
      %v282 = vunpack.c.l.b16 %v250
      %v283 = vunpack.c.l.b16 %v251
      %v284 = vunpack.c.l.b16 %v252
      %v285 = vunpack.c.l.b16 %v253
      %v286 = vunpack.c.l.b16 %v254
      %v287 = vunpack.c.l.b16 %v255
      %v288 = vunpack.c.l.b16 %v256
      %v289 = vunpack.c.l.b16 %v257
      %v290 = vpack.c.b16 %v275, %v274
      %v291 = vpack.c.b16 %v277, %v276
      %v292 = vpack.c.b16 %v279, %v278
      %v293 = vpack.c.b16 %v281, %v280
      %v294 = vpack.c.b16 %v283, %v282
      %v295 = vpack.c.b16 %v285, %v284
      %v296 = vpack.c.b16 %v287, %v286
      %v297 = vpack.c.b16 %v289, %v288
      %306 = vmatprep.subr.bf16.mxu0 0
      %307 = vmatpush1.bf16.msra.mxu0 %v297
      %308 = vmatprep.subr.bf16.mxu0 0
      %309 = vmatpush1.bf16.msra.mxu0 %v296
      %310 = vmatprep.subr.bf16.mxu0 0
      %311 = vmatpush1.bf16.msra.mxu0 %v295
      %312 = vmatprep.subr.bf16.mxu0 0
      %313 = vmatpush1.bf16.msra.mxu0 %v294
      %314 = vmatprep.subr.bf16.mxu0 0
      %315 = vmatpush1.bf16.msra.mxu0 %v293
      %316 = vmatprep.subr.bf16.mxu0 0
      %317 = vmatpush1.bf16.msra.mxu0 %v292
      %318 = vmatprep.subr.bf16.mxu0 0
      %319 = vmatpush1.bf16.msra.mxu0 %v291
      %320 = vmatprep.subr.bf16.mxu0 0
      %321 = vmatpush1.bf16.msra.mxu0 %v290
      %322 = vmatprep.subr.bf16.mxu0 0
      %323 = vmatpush2.bf16.msra.mxu0 0
      %324 = vmatprep.subr.bf16.mxu0 0
      %325 = vmatpush2.bf16.msra.mxu0 0
      %326 = vmatprep.subr.bf16.mxu0 0
      %327 = vmatpush2.bf16.msra.mxu0 0
      %328 = vmatprep.subr.bf16.mxu0 0
      %329 = vmatpush2.bf16.msra.mxu0 0
      %330 = vmatprep.subr.bf16.mxu0 0
      %331 = vmatpush2.bf16.msra.mxu0 0
      %332 = vmatprep.subr.bf16.mxu0 0
      %333 = vmatpush2.bf16.msra.mxu0 0
      %334 = vmatprep.subr.bf16.mxu0 0
      %335 = vmatpush2.bf16.msra.mxu0 0
      %336 = vmatprep.subr.bf16.mxu0 0
      %337 = vmatpush2.bf16.msra.mxu0 0
      %338 = vmatprep.mubr.bf16.mxu0 0
      %339 = vmatmul.mubr.bf16.gmra.mxu0 %v237
      %v340 = vpop.f32.mrf.mxu0
      %v341 = vadd.f32 0.0, %v340
      %v342 = vpop.f32.mrf.mxu0
      %v343 = vpop.f32.mrf.mxu0
      %v344 = vadd.f32 0.0, %v343
      %v345 = vpop.f32.mrf.mxu0
      %346 = vmatprep.mubr.bf16.mxu0 0
      %347 = vmatmul.mubr.bf16.gmra.mxu0 %v238
      %v348 = vpop.f32.mrf.mxu0
      %v349 = vadd.f32 0.0, %v348
      %v350 = vpop.f32.mrf.mxu0
      %v351 = vpop.f32.mrf.mxu0
      %v352 = vadd.f32 0.0, %v351
      %v353 = vpop.f32.mrf.mxu0
      %354 = vmatprep.mubr.bf16.mxu0 0
      %355 = vmatmul.mubr.bf16.gmra.mxu0 %v239
      %v356 = vpop.f32.mrf.mxu0
      %v357 = vadd.f32 0.0, %v356
      %v358 = vpop.f32.mrf.mxu0
      %v359 = vpop.f32.mrf.mxu0
      %v360 = vadd.f32 0.0, %v359
      %v361 = vpop.f32.mrf.mxu0
      %362 = vmatprep.mubr.bf16.mxu0 0
      %363 = vmatmul.mubr.bf16.gmra.mxu0 %v240
      %v364 = vpop.f32.mrf.mxu0
      %v365 = vadd.f32 0.0, %v364
      %v366 = vpop.f32.mrf.mxu0
      %v367 = vpop.f32.mrf.mxu0
      %v368 = vpop.f32.mrf.mxu0
      %369 = vdwg.mxu0
      %v386 = vunpack.c.l.b16 %v221
      %v387 = vunpack.c.l.b16 %v222
      %v388 = vunpack.c.l.b16 %v223
      %v389 = vunpack.c.l.b16 %v224
      %v390 = vunpack.c.l.b16 %v225
      %v391 = vunpack.c.l.b16 %v226
      %v392 = vunpack.c.l.b16 %v227
      %v393 = vunpack.c.l.b16 %v228
      %v394 = vunpack.c.l.b16 %v229
      %v395 = vunpack.c.l.b16 %v230
      %v396 = vunpack.c.l.b16 %v231
      %v397 = vunpack.c.l.b16 %v232
      %v398 = vunpack.c.l.b16 %v233
      %v399 = vunpack.c.l.b16 %v234
      %v400 = vunpack.c.l.b16 %v235
      %v401 = vunpack.c.l.b16 %v236
      %v402 = vpack.c.b16 %v387, %v386
      %v403 = vpack.c.b16 %v389, %v388
      %v404 = vpack.c.b16 %v391, %v390
      %v405 = vpack.c.b16 %v393, %v392
      %v406 = vpack.c.b16 %v395, %v394
      %v407 = vpack.c.b16 %v397, %v396
      %v408 = vpack.c.b16 %v399, %v398
      %v409 = vpack.c.b16 %v401, %v400
      %418 = vmatprep.subr.bf16.mxu0 0
      %419 = vmatpush1.bf16.msra.mxu0 %v409
      %420 = vmatprep.subr.bf16.mxu0 0
      %421 = vmatpush1.bf16.msra.mxu0 %v408
      %422 = vmatprep.subr.bf16.mxu0 0
      %423 = vmatpush1.bf16.msra.mxu0 %v407
      %424 = vmatprep.subr.bf16.mxu0 0
      %425 = vmatpush1.bf16.msra.mxu0 %v406
      %426 = vmatprep.subr.bf16.mxu0 0
      %427 = vmatpush1.bf16.msra.mxu0 %v405
      %428 = vmatprep.subr.bf16.mxu0 0
      %429 = vmatpush1.bf16.msra.mxu0 %v404
      %430 = vmatprep.subr.bf16.mxu0 0
      %431 = vmatpush1.bf16.msra.mxu0 %v403
      %432 = vmatprep.subr.bf16.mxu0 0
      %433 = vmatpush1.bf16.msra.mxu0 %v402
      %434 = vmatprep.subr.bf16.mxu0 0
      %435 = vmatpush2.bf16.msra.mxu0 0
      %436 = vmatprep.subr.bf16.mxu0 0
      %437 = vmatpush2.bf16.msra.mxu0 0
      %438 = vmatprep.subr.bf16.mxu0 0
      %439 = vmatpush2.bf16.msra.mxu0 0
      %440 = vmatprep.subr.bf16.mxu0 0
      %441 = vmatpush2.bf16.msra.mxu0 0
      %442 = vmatprep.subr.bf16.mxu0 0
      %443 = vmatpush2.bf16.msra.mxu0 0
      %444 = vmatprep.subr.bf16.mxu0 0
      %445 = vmatpush2.bf16.msra.mxu0 0
      %446 = vmatprep.subr.bf16.mxu0 0
      %447 = vmatpush2.bf16.msra.mxu0 0
      %448 = vmatprep.subr.bf16.mxu0 0
      %449 = vmatpush2.bf16.msra.mxu0 0
      %450 = vmatprep.mubr.bf16.mxu0 0
      %451 = vmatmul.mubr.bf16.gmra.mxu0 %v217
      %v452 = vpop.f32.mrf.mxu0
      %v453 = vadd.f32 %v341, %v452
      %v454 = vpop.f32.mrf.mxu0
      %v455 = vpop.f32.mrf.mxu0
      %v456 = vadd.f32 %v344, %v455
      %v457 = vpop.f32.mrf.mxu0
      %458 = vmatprep.mubr.bf16.mxu0 0
      %459 = vmatmul.mubr.bf16.gmra.mxu0 %v218
      %v460 = vpop.f32.mrf.mxu0
      %v461 = vadd.f32 %v349, %v460
      %v462 = vpop.f32.mrf.mxu0
      %v463 = vpop.f32.mrf.mxu0
      %v464 = vadd.f32 %v352, %v463
      %v465 = vpop.f32.mrf.mxu0
      %466 = vmatprep.mubr.bf16.mxu0 0
      %467 = vmatmul.mubr.bf16.gmra.mxu0 %v219
      %v468 = vpop.f32.mrf.mxu0
      %v469 = vadd.f32 %v357, %v468
      %v470 = vpop.f32.mrf.mxu0
      %v471 = vpop.f32.mrf.mxu0
      %v472 = vadd.f32 %v360, %v471
      %v473 = vpop.f32.mrf.mxu0
      %474 = vmatprep.mubr.bf16.mxu0 0
      %475 = vmatmul.mubr.bf16.gmra.mxu0 %v220
      %v476 = vpop.f32.mrf.mxu0
      %v477 = vadd.f32 %v365, %v476
      %v478 = vpop.f32.mrf.mxu0
      %v479 = vpop.f32.mrf.mxu0
      %v480 = vpop.f32.mrf.mxu0
      %481 = vdwg.mxu0
      %s482 = scalar_lea.vmem %s166, 72
      %v483 = vld [vmem:[%s482] sm:$0xff]
      %v484 = vld [vmem:[%s482 + $0x8] sm:$0xff]
      %v485 = vld [vmem:[%s482 + $0x10] sm:$0xff]
      %v486 = vld [vmem:[%s482 + $0x18] sm:$0xff]
      %v487 = vld [vmem:[%s482 + $0x20] sm:$0xff]
      %v488 = vld [vmem:[%s482 + $0x28] sm:$0xff]
      %v489 = vld [vmem:[%s482 + $0x30] sm:$0xff]
      %v490 = vld [vmem:[%s482 + $0x1] sm:$0xff]
      %v491 = vld [vmem:[%s482 + $0x9] sm:$0xff]
      %v492 = vld [vmem:[%s482 + $0x11] sm:$0xff]
      %v493 = vld [vmem:[%s482 + $0x19] sm:$0xff]
      %v494 = vld [vmem:[%s482 + $0x21] sm:$0xff]
      %v495 = vld [vmem:[%s482 + $0x29] sm:$0xff]
      %v496 = vld [vmem:[%s482 + $0x31] sm:$0xff]
      %v497 = vmax.f32 %v483, %v490
      %v498 = vmax.f32 %v484, %v491
      %v499 = vmax.f32 %v485, %v492
      %v500 = vmax.f32 %v486, %v493
      %v501 = vmax.f32 %v487, %v494
      %v502 = vmax.f32 %v488, %v495
      %v503 = vmax.f32 %v489, %v496
      %504 = vrot.lane.b32.xlu0 %v483, 64
      %v505 = vpop.permute.xlu0 %504
      %506 = vrot.lane.b32.xlu0 %v484, 64
      %v507 = vpop.permute.xlu0 %506
      %508 = vrot.lane.b32.xlu0 %v485, 64
      %v509 = vpop.permute.xlu0 %508
      %510 = vrot.lane.b32.xlu0 %v486, 64
      %v511 = vpop.permute.xlu0 %510
      %512 = vrot.lane.b32.xlu0 %v487, 64
      %v513 = vpop.permute.xlu0 %512
      %514 = vrot.lane.b32.xlu0 %v488, 64
      %v515 = vpop.permute.xlu0 %514
      %516 = vrot.lane.b32.xlu0 %v489, 64
      %v517 = vpop.permute.xlu0 %516
      %v518 = vmax.f32 %v497, %v505
      %v519 = vmax.f32 %v498, %v507
      %v520 = vmax.f32 %v499, %v509
      %v521 = vmax.f32 %v500, %v511
      %v522 = vmax.f32 %v501, %v513
      %v523 = vmax.f32 %v502, %v515
      %v524 = vmax.f32 %v503, %v517
      %v525 = vmax.f32 %v210, %v518
      %v526 = vmax.f32 %v211, %v519
      %v527 = vmax.f32 %v212, %v520
      %v528 = vmax.f32 %v213, %v521
      %v529 = vmax.f32 %v214, %v522
      %v530 = vmax.f32 %v215, %v523
      %v531 = vmax.f32 %v216, %v524
      %v532 = vpack.c.bf16 %v484, %v483
      %v533 = vpack.c.bf16 %v486, %v485
      %v534 = vpack.c.bf16 %v488, %v487
      %v535 = vpack.c.bf16 %v489, %v489
      %s536 = scalar_lea.vmem %s1, 128
      %v537 = vld [vmem:[%s536] sm:$0xf]
      %v538 = vld [vmem:[%s536 + $0x4] sm:$0xf]
      %v539 = vld [vmem:[%s536 + $0x8] sm:$0xf]
      %v540 = vld [vmem:[%s536 + $0xc] sm:$0xf]
      %v541 = vld [vmem:[%s536 + $0x10] sm:$0xf]
      %v542 = vld [vmem:[%s536 + $0x14] sm:$0xf]
      %v543 = vld [vmem:[%s536 + $0x18] sm:$0xf]
      %v544 = vld [vmem:[%s536 + $0x1c] sm:$0xf]
      %v545 = vld [vmem:[%s536 + $0x20] sm:$0xf]
      %v546 = vld [vmem:[%s536 + $0x24] sm:$0xf]
      %v547 = vld [vmem:[%s536 + $0x28] sm:$0xf]
      %v548 = vld [vmem:[%s536 + $0x2c] sm:$0xf]
      %v549 = vld [vmem:[%s536 + $0x30] sm:$0xf]
      %v550 = vld [vmem:[%s536 + $0x34] sm:$0xf]
      %v551 = vld [vmem:[%s536 + $0x38] sm:$0xf]
      %v552 = vld [vmem:[%s536 + $0x3c] sm:$0xf]
      %v569 = vunpack.c.l.b16 %v537
      %v570 = vunpack.c.l.b16 %v538
      %v571 = vunpack.c.l.b16 %v539
      %v572 = vunpack.c.l.b16 %v540
      %v573 = vunpack.c.l.b16 %v541
      %v574 = vunpack.c.l.b16 %v542
      %v575 = vunpack.c.l.b16 %v543
      %v576 = vunpack.c.l.b16 %v544
      %v577 = vunpack.c.l.b16 %v545
      %v578 = vunpack.c.l.b16 %v546
      %v579 = vunpack.c.l.b16 %v547
      %v580 = vunpack.c.l.b16 %v548
      %v581 = vunpack.c.l.b16 %v549
      %v582 = vunpack.c.l.b16 %v550
      %v583 = vunpack.c.l.b16 %v551
      %v584 = vunpack.c.l.b16 %v552
      %v585 = vpack.c.b16 %v570, %v569
      %v586 = vpack.c.b16 %v572, %v571
      %v587 = vpack.c.b16 %v574, %v573
      %v588 = vpack.c.b16 %v576, %v575
      %v589 = vpack.c.b16 %v578, %v577
      %v590 = vpack.c.b16 %v580, %v579
      %v591 = vpack.c.b16 %v582, %v581
      %v592 = vpack.c.b16 %v584, %v583
      %601 = vmatprep.subr.bf16.mxu0 0
      %602 = vmatpush1.bf16.msra.mxu0 %v592
      %603 = vmatprep.subr.bf16.mxu0 0
      %604 = vmatpush1.bf16.msra.mxu0 %v591
      %605 = vmatprep.subr.bf16.mxu0 0
      %606 = vmatpush1.bf16.msra.mxu0 %v590
      %607 = vmatprep.subr.bf16.mxu0 0
      %608 = vmatpush1.bf16.msra.mxu0 %v589
      %609 = vmatprep.subr.bf16.mxu0 0
      %610 = vmatpush1.bf16.msra.mxu0 %v588
      %611 = vmatprep.subr.bf16.mxu0 0
      %612 = vmatpush1.bf16.msra.mxu0 %v587
      %613 = vmatprep.subr.bf16.mxu0 0
      %614 = vmatpush1.bf16.msra.mxu0 %v586
      %615 = vmatprep.subr.bf16.mxu0 0
      %616 = vmatpush1.bf16.msra.mxu0 %v585
      %617 = vmatprep.subr.bf16.mxu0 0
      %618 = vmatpush2.bf16.msra.mxu0 0
      %619 = vmatprep.subr.bf16.mxu0 0
      %620 = vmatpush2.bf16.msra.mxu0 0
      %621 = vmatprep.subr.bf16.mxu0 0
      %622 = vmatpush2.bf16.msra.mxu0 0
      %623 = vmatprep.subr.bf16.mxu0 0
      %624 = vmatpush2.bf16.msra.mxu0 0
      %625 = vmatprep.subr.bf16.mxu0 0
      %626 = vmatpush2.bf16.msra.mxu0 0
      %627 = vmatprep.subr.bf16.mxu0 0
      %628 = vmatpush2.bf16.msra.mxu0 0
      %629 = vmatprep.subr.bf16.mxu0 0
      %630 = vmatpush2.bf16.msra.mxu0 0
      %631 = vmatprep.subr.bf16.mxu0 0
      %632 = vmatpush2.bf16.msra.mxu0 0
      %633 = vmatprep.mubr.bf16.mxu0 0
      %634 = vmatmul.mubr.bf16.gmra.mxu0 %v532
      %v635 = vpop.f32.mrf.mxu0
      %v636 = vadd.f32 0.0, %v635
      %v637 = vpop.f32.mrf.mxu0
      %v638 = vpop.f32.mrf.mxu0
      %v639 = vadd.f32 0.0, %v638
      %v640 = vpop.f32.mrf.mxu0
      %641 = vmatprep.mubr.bf16.mxu0 0
      %642 = vmatmul.mubr.bf16.gmra.mxu0 %v533
      %v643 = vpop.f32.mrf.mxu0
      %v644 = vadd.f32 0.0, %v643
      %v645 = vpop.f32.mrf.mxu0
      %v646 = vpop.f32.mrf.mxu0
      %v647 = vadd.f32 0.0, %v646
      %v648 = vpop.f32.mrf.mxu0
      %649 = vmatprep.mubr.bf16.mxu0 0
      %650 = vmatmul.mubr.bf16.gmra.mxu0 %v534
      %v651 = vpop.f32.mrf.mxu0
      %v652 = vadd.f32 0.0, %v651
      %v653 = vpop.f32.mrf.mxu0
      %v654 = vpop.f32.mrf.mxu0
      %v655 = vadd.f32 0.0, %v654
      %v656 = vpop.f32.mrf.mxu0
      %657 = vmatprep.mubr.bf16.mxu0 0
      %658 = vmatmul.mubr.bf16.gmra.mxu0 %v535
      %v659 = vpop.f32.mrf.mxu0
      %v660 = vadd.f32 0.0, %v659
      %v661 = vpop.f32.mrf.mxu0
      %v662 = vpop.f32.mrf.mxu0
      %v663 = vpop.f32.mrf.mxu0
      %664 = vdwg.mxu0
      %v665 = vadd.f32 %v453, %v636
      %v666 = vadd.f32 %v456, %v639
      %v667 = vadd.f32 %v461, %v644
      %v668 = vadd.f32 %v464, %v647
      %v669 = vadd.f32 %v469, %v652
      %v670 = vadd.f32 %v472, %v655
      %v671 = vadd.f32 %v477, %v660
      %v672 = vpack.c.bf16 %v491, %v490
      %v673 = vpack.c.bf16 %v493, %v492
      %v674 = vpack.c.bf16 %v495, %v494
      %v675 = vpack.c.bf16 %v496, %v496
      %s676 = scalar_lea.vmem %s1, 192
      %v677 = vld [vmem:[%s676] sm:$0xf]
      %v678 = vld [vmem:[%s676 + $0x4] sm:$0xf]
      %v679 = vld [vmem:[%s676 + $0x8] sm:$0xf]
      %v680 = vld [vmem:[%s676 + $0xc] sm:$0xf]
      %v681 = vld [vmem:[%s676 + $0x10] sm:$0xf]
      %v682 = vld [vmem:[%s676 + $0x14] sm:$0xf]
      %v683 = vld [vmem:[%s676 + $0x18] sm:$0xf]
      %v684 = vld [vmem:[%s676 + $0x1c] sm:$0xf]
      %v685 = vld [vmem:[%s676 + $0x20] sm:$0xf]
      %v686 = vld [vmem:[%s676 + $0x24] sm:$0xf]
      %v687 = vld [vmem:[%s676 + $0x28] sm:$0xf]
      %v688 = vld [vmem:[%s676 + $0x2c] sm:$0xf]
      %v689 = vld [vmem:[%s676 + $0x30] sm:$0xf]
      %v690 = vld [vmem:[%s676 + $0x34] sm:$0xf]
      %v691 = vld [vmem:[%s676 + $0x38] sm:$0xf]
      %v692 = vld [vmem:[%s676 + $0x3c] sm:$0xf]
      %v709 = vunpack.c.l.b16 %v677
      %v710 = vunpack.c.l.b16 %v678
      %v711 = vunpack.c.l.b16 %v679
      %v712 = vunpack.c.l.b16 %v680
      %v713 = vunpack.c.l.b16 %v681
      %v714 = vunpack.c.l.b16 %v682
      %v715 = vunpack.c.l.b16 %v683
      %v716 = vunpack.c.l.b16 %v684
      %v717 = vunpack.c.l.b16 %v685
      %v718 = vunpack.c.l.b16 %v686
      %v719 = vunpack.c.l.b16 %v687
      %v720 = vunpack.c.l.b16 %v688
      %v721 = vunpack.c.l.b16 %v689
      %v722 = vunpack.c.l.b16 %v690
      %v723 = vunpack.c.l.b16 %v691
      %v724 = vunpack.c.l.b16 %v692
      %v725 = vpack.c.b16 %v710, %v709
      %v726 = vpack.c.b16 %v712, %v711
      %v727 = vpack.c.b16 %v714, %v713
      %v728 = vpack.c.b16 %v716, %v715
      %v729 = vpack.c.b16 %v718, %v717
      %v730 = vpack.c.b16 %v720, %v719
      %v731 = vpack.c.b16 %v722, %v721
      %v732 = vpack.c.b16 %v724, %v723
      %741 = vmatprep.subr.bf16.mxu0 0
      %742 = vmatpush1.bf16.msra.mxu0 %v732
      %743 = vmatprep.subr.bf16.mxu0 0
      %744 = vmatpush1.bf16.msra.mxu0 %v731
      %745 = vmatprep.subr.bf16.mxu0 0
      %746 = vmatpush1.bf16.msra.mxu0 %v730
      %747 = vmatprep.subr.bf16.mxu0 0
      %748 = vmatpush1.bf16.msra.mxu0 %v729
      %749 = vmatprep.subr.bf16.mxu0 0
      %750 = vmatpush1.bf16.msra.mxu0 %v728
      %751 = vmatprep.subr.bf16.mxu0 0
      %752 = vmatpush1.bf16.msra.mxu0 %v727
      %753 = vmatprep.subr.bf16.mxu0 0
      %754 = vmatpush1.bf16.msra.mxu0 %v726
      %755 = vmatprep.subr.bf16.mxu0 0
      %756 = vmatpush1.bf16.msra.mxu0 %v725
      %757 = vmatprep.subr.bf16.mxu0 0
      %758 = vmatpush2.bf16.msra.mxu0 0
      %759 = vmatprep.subr.bf16.mxu0 0
      %760 = vmatpush2.bf16.msra.mxu0 0
      %761 = vmatprep.subr.bf16.mxu0 0
      %762 = vmatpush2.bf16.msra.mxu0 0
      %763 = vmatprep.subr.bf16.mxu0 0
      %764 = vmatpush2.bf16.msra.mxu0 0
      %765 = vmatprep.subr.bf16.mxu0 0
      %766 = vmatpush2.bf16.msra.mxu0 0
      %767 = vmatprep.subr.bf16.mxu0 0
      %768 = vmatpush2.bf16.msra.mxu0 0
      %769 = vmatprep.subr.bf16.mxu0 0
      %770 = vmatpush2.bf16.msra.mxu0 0
      %771 = vmatprep.subr.bf16.mxu0 0
      %772 = vmatpush2.bf16.msra.mxu0 0
      %773 = vmatprep.mubr.bf16.mxu0 0
      %774 = vmatmul.mubr.bf16.gmra.mxu0 %v672
      %v775 = vpop.f32.mrf.mxu0
      %v776 = vadd.f32 0.0, %v775
      %v777 = vpop.f32.mrf.mxu0
      %v778 = vpop.f32.mrf.mxu0
      %v779 = vadd.f32 0.0, %v778
      %v780 = vpop.f32.mrf.mxu0
      %781 = vmatprep.mubr.bf16.mxu0 0
      %782 = vmatmul.mubr.bf16.gmra.mxu0 %v673
      %v783 = vpop.f32.mrf.mxu0
      %v784 = vadd.f32 0.0, %v783
      %v785 = vpop.f32.mrf.mxu0
      %v786 = vpop.f32.mrf.mxu0
      %v787 = vadd.f32 0.0, %v786
      %v788 = vpop.f32.mrf.mxu0
      %789 = vmatprep.mubr.bf16.mxu0 0
      %790 = vmatmul.mubr.bf16.gmra.mxu0 %v674
      %v791 = vpop.f32.mrf.mxu0
      %v792 = vadd.f32 0.0, %v791
      %v793 = vpop.f32.mrf.mxu0
      %v794 = vpop.f32.mrf.mxu0
      %v795 = vadd.f32 0.0, %v794
      %v796 = vpop.f32.mrf.mxu0
      %797 = vmatprep.mubr.bf16.mxu0 0
      %798 = vmatmul.mubr.bf16.gmra.mxu0 %v675
      %v799 = vpop.f32.mrf.mxu0
      %v800 = vadd.f32 0.0, %v799
      %v801 = vpop.f32.mrf.mxu0
      %v802 = vpop.f32.mrf.mxu0
      %v803 = vpop.f32.mrf.mxu0
      %804 = vdwg.mxu0
      %v805 = vadd.f32 %v665, %v776
      %v806 = vadd.f32 %v666, %v779
      %v807 = vadd.f32 %v667, %v784
      %v808 = vadd.f32 %v668, %v787
      %v809 = vadd.f32 %v669, %v792
      %v810 = vadd.f32 %v670, %v795
      %v811 = vadd.f32 %v671, %v800
      %v812 = vld [vmem:[%s166 + $0x8] sm:$0xff]
      %v813 = vld [vmem:[%s166 + $0x10] sm:$0xff]
      %v814 = vld [vmem:[%s166 + $0x18] sm:$0xff]
      %v815 = vld [vmem:[%s166 + $0x20] sm:$0xff]
      %v816 = vld [vmem:[%s166 + $0x28] sm:$0xff]
      %v817 = vld [vmem:[%s166 + $0x30] sm:$0xff]
      %v818 = vld [vmem:[%s166 + $0x38] sm:$0xff]
      %v819 = vld [vmem:[%s166 + $0x9] sm:$0xff]
      %v820 = vld [vmem:[%s166 + $0x11] sm:$0xff]
      %v821 = vld [vmem:[%s166 + $0x19] sm:$0xff]
      %v822 = vld [vmem:[%s166 + $0x21] sm:$0xff]
      %v823 = vld [vmem:[%s166 + $0x29] sm:$0xff]
      %v824 = vld [vmem:[%s166 + $0x31] sm:$0xff]
      %v825 = vld [vmem:[%s166 + $0x39] sm:$0xff]
      %v826 = vmax.f32 %v812, %v819
      %v827 = vmax.f32 %v813, %v820
      %v828 = vmax.f32 %v814, %v821
      %v829 = vmax.f32 %v815, %v822
      %v830 = vmax.f32 %v816, %v823
      %v831 = vmax.f32 %v817, %v824
      %v832 = vmax.f32 %v818, %v825
      %833 = vrot.lane.b32.xlu0 %v812, 64
      %v834 = vpop.permute.xlu0 %833
      %835 = vrot.lane.b32.xlu0 %v813, 64
      %v836 = vpop.permute.xlu0 %835
      %837 = vrot.lane.b32.xlu0 %v814, 64
      %v838 = vpop.permute.xlu0 %837
      %839 = vrot.lane.b32.xlu0 %v815, 64
      %v840 = vpop.permute.xlu0 %839
      %841 = vrot.lane.b32.xlu0 %v816, 64
      %v842 = vpop.permute.xlu0 %841
      %843 = vrot.lane.b32.xlu0 %v817, 64
      %v844 = vpop.permute.xlu0 %843
      %845 = vrot.lane.b32.xlu0 %v818, 64
      %v846 = vpop.permute.xlu0 %845
      %v847 = vmax.f32 %v826, %v834
      %v848 = vmax.f32 %v827, %v836
      %v849 = vmax.f32 %v828, %v838
      %v850 = vmax.f32 %v829, %v840
      %v851 = vmax.f32 %v830, %v842
      %v852 = vmax.f32 %v831, %v844
      %v853 = vmax.f32 %v832, %v846
      %v854 = vmax.f32 %v525, %v847
      %v855 = vmax.f32 %v526, %v848
      %v856 = vmax.f32 %v527, %v849
      %v857 = vmax.f32 %v528, %v850
      %v858 = vmax.f32 %v529, %v851
      %v859 = vmax.f32 %v530, %v852
      %v860 = vmax.f32 %v531, %v853
      %v861 = vpack.c.bf16 %v813, %v812
      %v862 = vpack.c.bf16 %v815, %v814
      %v863 = vpack.c.bf16 %v817, %v816
      %v864 = vpack.c.bf16 %v818, %v818
      %s865 = scalar_lea.vmem %s1, 256
      %v866 = vld [vmem:[%s865] sm:$0xf]
      %v867 = vld [vmem:[%s865 + $0x4] sm:$0xf]
      %v868 = vld [vmem:[%s865 + $0x8] sm:$0xf]
      %v869 = vld [vmem:[%s865 + $0xc] sm:$0xf]
      %v870 = vld [vmem:[%s865 + $0x10] sm:$0xf]
      %v871 = vld [vmem:[%s865 + $0x14] sm:$0xf]
      %v872 = vld [vmem:[%s865 + $0x18] sm:$0xf]
      %v873 = vld [vmem:[%s865 + $0x1c] sm:$0xf]
      %v874 = vld [vmem:[%s865 + $0x20] sm:$0xf]
      %v875 = vld [vmem:[%s865 + $0x24] sm:$0xf]
      %v876 = vld [vmem:[%s865 + $0x28] sm:$0xf]
      %v877 = vld [vmem:[%s865 + $0x2c] sm:$0xf]
      %v878 = vld [vmem:[%s865 + $0x30] sm:$0xf]
      %v879 = vld [vmem:[%s865 + $0x34] sm:$0xf]
      %v880 = vld [vmem:[%s865 + $0x38] sm:$0xf]
      %v881 = vld [vmem:[%s865 + $0x3c] sm:$0xf]
      %v898 = vunpack.c.l.b16 %v866
      %v899 = vunpack.c.l.b16 %v867
      %v900 = vunpack.c.l.b16 %v868
      %v901 = vunpack.c.l.b16 %v869
      %v902 = vunpack.c.l.b16 %v870
      %v903 = vunpack.c.l.b16 %v871
      %v904 = vunpack.c.l.b16 %v872
      %v905 = vunpack.c.l.b16 %v873
      %v906 = vunpack.c.l.b16 %v874
      %v907 = vunpack.c.l.b16 %v875
      %v908 = vunpack.c.l.b16 %v876
      %v909 = vunpack.c.l.b16 %v877
      %v910 = vunpack.c.l.b16 %v878
      %v911 = vunpack.c.l.b16 %v879
      %v912 = vunpack.c.l.b16 %v880
      %v913 = vunpack.c.l.b16 %v881
      %v914 = vpack.c.b16 %v899, %v898
      %v915 = vpack.c.b16 %v901, %v900
      %v916 = vpack.c.b16 %v903, %v902
      %v917 = vpack.c.b16 %v905, %v904
      %v918 = vpack.c.b16 %v907, %v906
      %v919 = vpack.c.b16 %v909, %v908
      %v920 = vpack.c.b16 %v911, %v910
      %v921 = vpack.c.b16 %v913, %v912
      %930 = vmatprep.subr.bf16.mxu0 0
      %931 = vmatpush1.bf16.msra.mxu0 %v921
      %932 = vmatprep.subr.bf16.mxu0 0
      %933 = vmatpush1.bf16.msra.mxu0 %v920
      %934 = vmatprep.subr.bf16.mxu0 0
      %935 = vmatpush1.bf16.msra.mxu0 %v919
      %936 = vmatprep.subr.bf16.mxu0 0
      %937 = vmatpush1.bf16.msra.mxu0 %v918
      %938 = vmatprep.subr.bf16.mxu0 0
      %939 = vmatpush1.bf16.msra.mxu0 %v917
      %940 = vmatprep.subr.bf16.mxu0 0
      %941 = vmatpush1.bf16.msra.mxu0 %v916
      %942 = vmatprep.subr.bf16.mxu0 0
      %943 = vmatpush1.bf16.msra.mxu0 %v915
      %944 = vmatprep.subr.bf16.mxu0 0
      %945 = vmatpush1.bf16.msra.mxu0 %v914
      %946 = vmatprep.subr.bf16.mxu0 0
      %947 = vmatpush2.bf16.msra.mxu0 0
      %948 = vmatprep.subr.bf16.mxu0 0
      %949 = vmatpush2.bf16.msra.mxu0 0
      %950 = vmatprep.subr.bf16.mxu0 0
      %951 = vmatpush2.bf16.msra.mxu0 0
      %952 = vmatprep.subr.bf16.mxu0 0
      %953 = vmatpush2.bf16.msra.mxu0 0
      %954 = vmatprep.subr.bf16.mxu0 0
      %955 = vmatpush2.bf16.msra.mxu0 0
      %956 = vmatprep.subr.bf16.mxu0 0
      %957 = vmatpush2.bf16.msra.mxu0 0
      %958 = vmatprep.subr.bf16.mxu0 0
      %959 = vmatpush2.bf16.msra.mxu0 0
      %960 = vmatprep.subr.bf16.mxu0 0
      %961 = vmatpush2.bf16.msra.mxu0 0
      %962 = vmatprep.mubr.bf16.mxu0 0
      %963 = vmatmul.mubr.bf16.gmra.mxu0 %v861
      %v964 = vpop.f32.mrf.mxu0
      %v965 = vadd.f32 0.0, %v964
      %v966 = vpop.f32.mrf.mxu0
      %v967 = vpop.f32.mrf.mxu0
      %v968 = vadd.f32 0.0, %v967
      %v969 = vpop.f32.mrf.mxu0
      %970 = vmatprep.mubr.bf16.mxu0 0
      %971 = vmatmul.mubr.bf16.gmra.mxu0 %v862
      %v972 = vpop.f32.mrf.mxu0
      %v973 = vadd.f32 0.0, %v972
      %v974 = vpop.f32.mrf.mxu0
      %v975 = vpop.f32.mrf.mxu0
      %v976 = vadd.f32 0.0, %v975
      %v977 = vpop.f32.mrf.mxu0
      %978 = vmatprep.mubr.bf16.mxu0 0
      %979 = vmatmul.mubr.bf16.gmra.mxu0 %v863
      %v980 = vpop.f32.mrf.mxu0
      %v981 = vadd.f32 0.0, %v980
      %v982 = vpop.f32.mrf.mxu0
      %v983 = vpop.f32.mrf.mxu0
      %v984 = vadd.f32 0.0, %v983
      %v985 = vpop.f32.mrf.mxu0
      %986 = vmatprep.mubr.bf16.mxu0 0
      %987 = vmatmul.mubr.bf16.gmra.mxu0 %v864
      %v988 = vpop.f32.mrf.mxu0
      %v989 = vadd.f32 0.0, %v988
      %v990 = vpop.f32.mrf.mxu0
      %v991 = vpop.f32.mrf.mxu0
      %v992 = vpop.f32.mrf.mxu0
      %993 = vdwg.mxu0
      %v994 = vadd.f32 %v805, %v965
      %v995 = vadd.f32 %v806, %v968
      %v996 = vadd.f32 %v807, %v973
      %v997 = vadd.f32 %v808, %v976
      %v998 = vadd.f32 %v809, %v981
      %v999 = vadd.f32 %v810, %v984
      %v1000 = vadd.f32 %v811, %v989
      %v1001 = vpack.c.bf16 %v820, %v819
      %v1002 = vpack.c.bf16 %v822, %v821
      %v1003 = vpack.c.bf16 %v824, %v823
      %v1004 = vpack.c.bf16 %v825, %v825
      %s1005 = scalar_lea.vmem %s1, 320
      %v1006 = vld [vmem:[%s1005] sm:$0xf]
      %v1007 = vld [vmem:[%s1005 + $0x4] sm:$0xf]
      %v1008 = vld [vmem:[%s1005 + $0x8] sm:$0xf]
      %v1009 = vld [vmem:[%s1005 + $0xc] sm:$0xf]
      %v1010 = vld [vmem:[%s1005 + $0x10] sm:$0xf]
      %v1011 = vld [vmem:[%s1005 + $0x14] sm:$0xf]
      %v1012 = vld [vmem:[%s1005 + $0x18] sm:$0xf]
      %v1013 = vld [vmem:[%s1005 + $0x1c] sm:$0xf]
      %v1014 = vld [vmem:[%s1005 + $0x20] sm:$0xf]
      %v1015 = vld [vmem:[%s1005 + $0x24] sm:$0xf]
      %v1016 = vld [vmem:[%s1005 + $0x28] sm:$0xf]
      %v1017 = vld [vmem:[%s1005 + $0x2c] sm:$0xf]
      %v1018 = vld [vmem:[%s1005 + $0x30] sm:$0xf]
      %v1019 = vld [vmem:[%s1005 + $0x34] sm:$0xf]
      %v1020 = vld [vmem:[%s1005 + $0x38] sm:$0xf]
      %v1021 = vld [vmem:[%s1005 + $0x3c] sm:$0xf]
      %v1038 = vunpack.c.l.b16 %v1006
      %v1039 = vunpack.c.l.b16 %v1007
      %v1040 = vunpack.c.l.b16 %v1008
      %v1041 = vunpack.c.l.b16 %v1009
      %v1042 = vunpack.c.l.b16 %v1010
      %v1043 = vunpack.c.l.b16 %v1011
      %v1044 = vunpack.c.l.b16 %v1012
      %v1045 = vunpack.c.l.b16 %v1013
      %v1046 = vunpack.c.l.b16 %v1014
      %v1047 = vunpack.c.l.b16 %v1015
      %v1048 = vunpack.c.l.b16 %v1016
      %v1049 = vunpack.c.l.b16 %v1017
      %v1050 = vunpack.c.l.b16 %v1018
      %v1051 = vunpack.c.l.b16 %v1019
      %v1052 = vunpack.c.l.b16 %v1020
      %v1053 = vunpack.c.l.b16 %v1021
      %v1054 = vpack.c.b16 %v1039, %v1038
      %v1055 = vpack.c.b16 %v1041, %v1040
      %v1056 = vpack.c.b16 %v1043, %v1042
      %v1057 = vpack.c.b16 %v1045, %v1044
      %v1058 = vpack.c.b16 %v1047, %v1046
      %v1059 = vpack.c.b16 %v1049, %v1048
      %v1060 = vpack.c.b16 %v1051, %v1050
      %v1061 = vpack.c.b16 %v1053, %v1052
      %1070 = vmatprep.subr.bf16.mxu0 0
      %1071 = vmatpush1.bf16.msra.mxu0 %v1061
      %1072 = vmatprep.subr.bf16.mxu0 0
      %1073 = vmatpush1.bf16.msra.mxu0 %v1060
      %1074 = vmatprep.subr.bf16.mxu0 0
      %1075 = vmatpush1.bf16.msra.mxu0 %v1059
      %1076 = vmatprep.subr.bf16.mxu0 0
      %1077 = vmatpush1.bf16.msra.mxu0 %v1058
      %1078 = vmatprep.subr.bf16.mxu0 0
      %1079 = vmatpush1.bf16.msra.mxu0 %v1057
      %1080 = vmatprep.subr.bf16.mxu0 0
      %1081 = vmatpush1.bf16.msra.mxu0 %v1056
      %1082 = vmatprep.subr.bf16.mxu0 0
      %1083 = vmatpush1.bf16.msra.mxu0 %v1055
      %1084 = vmatprep.subr.bf16.mxu0 0
      %1085 = vmatpush1.bf16.msra.mxu0 %v1054
      %1086 = vmatprep.subr.bf16.mxu0 0
      %1087 = vmatpush2.bf16.msra.mxu0 0
      %1088 = vmatprep.subr.bf16.mxu0 0
      %1089 = vmatpush2.bf16.msra.mxu0 0
      %1090 = vmatprep.subr.bf16.mxu0 0
      %1091 = vmatpush2.bf16.msra.mxu0 0
      %1092 = vmatprep.subr.bf16.mxu0 0
      %1093 = vmatpush2.bf16.msra.mxu0 0
      %1094 = vmatprep.subr.bf16.mxu0 0
      %1095 = vmatpush2.bf16.msra.mxu0 0
      %1096 = vmatprep.subr.bf16.mxu0 0
      %1097 = vmatpush2.bf16.msra.mxu0 0
      %1098 = vmatprep.subr.bf16.mxu0 0
      %1099 = vmatpush2.bf16.msra.mxu0 0
      %1100 = vmatprep.subr.bf16.mxu0 0
      %1101 = vmatpush2.bf16.msra.mxu0 0
      %1102 = vmatprep.mubr.bf16.mxu0 0
      %1103 = vmatmul.mubr.bf16.gmra.mxu0 %v1001
      %v1104 = vpop.f32.mrf.mxu0
      %v1105 = vadd.f32 0.0, %v1104
      %v1106 = vpop.f32.mrf.mxu0
      %v1107 = vpop.f32.mrf.mxu0
      %v1108 = vadd.f32 0.0, %v1107
      %v1109 = vpop.f32.mrf.mxu0
      %1110 = vmatprep.mubr.bf16.mxu0 0
      %1111 = vmatmul.mubr.bf16.gmra.mxu0 %v1002
      %v1112 = vpop.f32.mrf.mxu0
      %v1113 = vadd.f32 0.0, %v1112
      %v1114 = vpop.f32.mrf.mxu0
      %v1115 = vpop.f32.mrf.mxu0
      %v1116 = vadd.f32 0.0, %v1115
      %v1117 = vpop.f32.mrf.mxu0
      %1118 = vmatprep.mubr.bf16.mxu0 0
      %1119 = vmatmul.mubr.bf16.gmra.mxu0 %v1003
      %v1120 = vpop.f32.mrf.mxu0
      %v1121 = vadd.f32 0.0, %v1120
      %v1122 = vpop.f32.mrf.mxu0
      %v1123 = vpop.f32.mrf.mxu0
      %v1124 = vadd.f32 0.0, %v1123
      %v1125 = vpop.f32.mrf.mxu0
      %1126 = vmatprep.mubr.bf16.mxu0 0
      %1127 = vmatmul.mubr.bf16.gmra.mxu0 %v1004
      %v1128 = vpop.f32.mrf.mxu0
      %v1129 = vadd.f32 0.0, %v1128
      %v1130 = vpop.f32.mrf.mxu0
      %v1131 = vpop.f32.mrf.mxu0
      %v1132 = vpop.f32.mrf.mxu0
      %1133 = vdwg.mxu0
      %v1134 = vadd.f32 %v994, %v1105
      %v1135 = vadd.f32 %v995, %v1108
      %v1136 = vadd.f32 %v996, %v1113
      %v1137 = vadd.f32 %v997, %v1116
      %v1138 = vadd.f32 %v998, %v1121
      %v1139 = vadd.f32 %v999, %v1124
      %v1140 = vadd.f32 %v1000, %v1129
      %v1141 = vld [vmem:[%s2] sm:$0x1]
      %v1142 = vlaneseq
      %v1143 = vshrl.u32 %v1142, 7
      %v1144 = vsub.s32 0, %v1143
      %v1145 = vrot.slane %v1141, %v1144
      %v1146 = vmul.f32 %v1134, %v1145
      %v1147 = vmul.f32 %v1135, %v1145
      %v1148 = vmul.f32 %v1136, %v1145
      %v1149 = vmul.f32 %v1137, %v1145
      %v1150 = vmul.f32 %v1138, %v1145
      %v1151 = vmul.f32 %v1139, %v1145
      %v1152 = vmul.f32 %v1140, %v1145
      %v1153 = vld [vmem:[%s2 + $0x1] sm:$0x1]
      %v1154 = vlaneseq
      %v1155 = vshrl.u32 %v1154, 7
      %v1156 = vsub.s32 0, %v1155
      %v1157 = vrot.slane %v1153, %v1156
      %v1158 = vadd.f32 %v1146, %v1157
      %v1159 = vadd.f32 %v1147, %v1157
      %v1160 = vadd.f32 %v1148, %v1157
      %v1161 = vadd.f32 %v1149, %v1157
      %v1162 = vadd.f32 %v1150, %v1157
      %v1163 = vadd.f32 %v1151, %v1157
      %v1164 = vadd.f32 %v1152, %v1157
      %v1165 = vmax.f32 %v1158, 0.0
      %v1166 = vmax.f32 %v1159, 0.0
      %v1167 = vmax.f32 %v1160, 0.0
      %v1168 = vmax.f32 %v1161, 0.0
      %v1169 = vmax.f32 %v1162, 0.0
      %v1170 = vmax.f32 %v1163, 0.0
      %v1171 = vmax.f32 %v1164, 0.0
      %vm1172 = vcmask 523264
      %1173 = vst.msk [vmem:[%s172] sm:$0xff] %vm1172, %v854
      %1174 = vst.msk [vmem:[%s172 + $0x10] sm:$0xff] %vm1172, %v855
      %1175 = vst.msk [vmem:[%s172 + $0x20] sm:$0xff] %vm1172, %v856
      %1176 = vst.msk [vmem:[%s172 + $0x30] sm:$0xff] %vm1172, %v857
      %1177 = vst.msk [vmem:[%s172 + $0x40] sm:$0xff] %vm1172, %v858
      %1178 = vst.msk [vmem:[%s172 + $0x50] sm:$0xff] %vm1172, %v859
      %1179 = vst.msk [vmem:[%s172 + $0x60] sm:$0xff] %vm1172, %v860
      %1187 = vrot.lane.b32.xlu0 %v1165, 64
      %v1188 = vpop.permute.xlu0 %1187
      %1189 = vrot.lane.b32.xlu0 %v1166, 64
      %v1190 = vpop.permute.xlu0 %1189
      %1191 = vrot.lane.b32.xlu0 %v1167, 64
      %v1192 = vpop.permute.xlu0 %1191
      %1193 = vrot.lane.b32.xlu0 %v1168, 64
      %v1194 = vpop.permute.xlu0 %1193
      %1195 = vrot.lane.b32.xlu0 %v1169, 64
      %v1196 = vpop.permute.xlu0 %1195
      %1197 = vrot.lane.b32.xlu0 %v1170, 64
      %v1198 = vpop.permute.xlu0 %1197
      %1199 = vrot.lane.b32.xlu0 %v1171, 64
      %v1200 = vpop.permute.xlu0 %1199
      %vm1208 = vcmask 1048064
      %1209 = vst.msk [vmem:[%s172] sm:$0xff] %vm1208, %v1188
      %vm1210 = vcmask 261120
      %1211 = vst.msk [vmem:[%s172 + $0x8] sm:$0xff] %vm1210, %v1188
      %1212 = vst.msk [vmem:[%s172 + $0x10] sm:$0xff] %vm1208, %v1190
      %1213 = vst.msk [vmem:[%s172 + $0x18] sm:$0xff] %vm1210, %v1190
      %1214 = vst.msk [vmem:[%s172 + $0x20] sm:$0xff] %vm1208, %v1192
      %1215 = vst.msk [vmem:[%s172 + $0x28] sm:$0xff] %vm1210, %v1192
      %1216 = vst.msk [vmem:[%s172 + $0x30] sm:$0xff] %vm1208, %v1194
      %1217 = vst.msk [vmem:[%s172 + $0x38] sm:$0xff] %vm1210, %v1194
      %1218 = vst.msk [vmem:[%s172 + $0x40] sm:$0xff] %vm1208, %v1196
      %1219 = vst.msk [vmem:[%s172 + $0x48] sm:$0xff] %vm1210, %v1196
      %1220 = vst.msk [vmem:[%s172 + $0x50] sm:$0xff] %vm1208, %v1198
      %1221 = vst.msk [vmem:[%s172 + $0x58] sm:$0xff] %vm1210, %v1198
      %1222 = vst.msk [vmem:[%s172 + $0x60] sm:$0xff] %vm1208, %v1200
      %1223 = vst.msk [vmem:[%s172 + $0x68] sm:$0xff] %vm1210, %v1200
      %s1224 = smul.u32 7, %s14
      %p1225 = scmp.lt.s32.totalorder %s1224, 13
      %s1226 = scalar_select %p1225, %s1224, 13
      %s1227 = smul.addr %s1226, 2
      %s1228 = smul.addr %s1227, 8
      %s1229 = scalar_lea.vmem %s3, %s1228
      // Predicated region
      $region33: #{incept_block3a.1} parent=31 // pred_check
        %p1230 = pneg %p100
      $region34: #{incept_block3a.1} parent=31 // pred_check_branch
        %1232 = sbr.rel (%p1230) target = $region36
      $region35: #{incept_block3a.1} parent=31 // pred_region
        %s1233 = smul.u32 7, %s14
      $region36: #{incept_block3a.1} parent=31 // pred_fallthru
        _
    $region32: #{incept_block3a.1} parent=5 // pred_fallthru
      _
    %p1234 = scmp.le.s32.totalorder 2, %s9
    // Predicated region
    $region37: #{incept_block3a.1} parent=5 // pred_check
      %p1235 = pneg %p1234
    $region38: #{incept_block3a.1} parent=5 // pred_check_branch
      %1237 = sbr.rel (%p1235) target = $region40
    $region39: #{incept_block3a.1} parent=5 // pred_region
      %s1238 = ssub.s32 %s9, 2
      // Predicated region
      $region41: #{incept_block3a.1} parent=39 // pred_check
        %p1239 = pneg %p106
      $region42: #{incept_block3a.1} parent=39 // pred_check_branch
        %1241 = sbr.rel (%p1239) target = $region44
      $region43: #{incept_block3a.1} parent=39 // pred_region
        %s1242 = smul.u32 7, %s15
        %p1243 = scmp.lt.s32.totalorder %s1242, 13
        %s1244 = scalar_select %p1243, %s1242, 13
        %s1245 = smul.addr %s1244, 2
        %s1246 = smul.addr %s1245, 8
        %s1247 = scalar_lea.vmem %s3, %s1246
      $region44: #{incept_block3a.1} parent=39 // pred_fallthru
        _
    $region40: #{incept_block3a.1} parent=5 // pred_fallthru
      _
  $region6: #{incept_block3a.1} parent=0 // loop_footer
    %s13 = sadd.s32 1, %s9
  $region7: #{incept_block3a.1} parent=0 // loop_footer_branch
    %8 = sbr.rel target = $region3
  $region8: #{incept_block3a.1} parent=0 // loop_exit
    _

</llo_original>
